<compile_context>
chip_gen: v6e
topology: v6e:2x2x1
jax: 0.10.0
libtpu: 0.0.40
codegen_flags: <defaults>
</compile_context>

<pallas_src>
import numpy as np
import jax
import jax.numpy as jnp
from jax.experimental import pallas as pl
from jax.experimental.pallas import tpu as pltpu

_LANES = 1024            # lane-dense slab width (multiple of 128)
_MAX_BLOCK_ROWS = 512    # 512*1024*4B = 2 MiB per buffer
_SMALL_N_FUSE = 65536    # below this, let XLA fuse the plain jnp expression


def _cos_cutoff_kernel(params_ref, d_ref, o_ref):
    # params_ref: SMEM (2,) f32 = [pi/(2*R), R]
    scale = params_ref[0]
    r_max = params_ref[1]
    d = d_ref[...]
    c = jnp.cos(scale * d)
    # cmp + select (2 VPU ops) instead of cmp + cast + mul (3 ops)
    o_ref[...] = jnp.where(d <= r_max, c * c, 0.0)


def _round_up(x, m):
    return ((x + m - 1) // m) * m


def cos_cutoff(dist_tensor, hard_max_dist, *, small_n_threshold=_SMALL_N_FUSE):
    """Apply CosCutoff elementwise to a 1-D distance tensor."""
    dist_tensor = jnp.asarray(dist_tensor, dtype=jnp.float32)
    n = dist_tensor.shape[0]
    hard_max_dist = float(hard_max_dist)

    if n == 0:
        return jnp.zeros((0,), dtype=jnp.float32)

    if n < small_n_threshold:
        # Small pair lists: a fused XLA elementwise op beats any pallas_call.
        c = jnp.cos((np.pi / 2.0 / hard_max_dist) * dist_tensor)
        return jnp.where(dist_tensor <= hard_max_dist, c * c, 0.0)

    # Pad only to the slab lane width.  When n % 1024 == 0 this is a no-op and
    # the reshape below is free (no extra HBM pass).
    n_pad = _round_up(n, _LANES)
    if n_pad != n:
        padded = jnp.pad(dist_tensor, (0, n_pad - n))
    else:
        padded = dist_tensor
    rows = n_pad // _LANES
    slab = padded.reshape(rows, _LANES)

    # Big tiles, but aim for >= ~4 grid steps so the parallel axis can shard
    # across both v7x TensorCores; the partial last block is handled by Pallas.
    if rows <= 8:
        block_rows = rows                      # equals the full row extent
    else:
        block_rows = min(_MAX_BLOCK_ROWS, _round_up(pl.cdiv(rows, 4), 8))
    grid = (pl.cdiv(rows, block_rows),)

    # Runtime scalars in SMEM -> one compiled kernel for every cutoff value.
    params = jnp.asarray(
        [np.pi / (2.0 * hard_max_dist), hard_max_dist], dtype=jnp.float32
    )

    out = pl.pallas_call(
        _cos_cutoff_kernel,
        out_shape=jax.ShapeDtypeStruct((rows, _LANES), jnp.float32),
        grid_spec=pltpu.PrefetchScalarGridSpec(
            num_scalar_prefetch=0,
            grid=grid,
            in_specs=[
                pl.BlockSpec(memory_space=pltpu.MemorySpace.SMEM),
                pl.BlockSpec((block_rows, _LANES), lambda i: (i, 0)),
            ],
            out_specs=pl.BlockSpec((block_rows, _LANES), lambda i: (i, 0)),
        ),
        compiler_params=pltpu.CompilerParams(
            dimension_semantics=("parallel",),
        ),
    )(params, slab)

    # Padded lanes / masked rows are discarded here.
    return out.reshape(-1)[:n]


def _reference(dist, hard_max_dist):
    sense = np.cos(np.pi / 2 * dist / hard_max_dist) ** 2
    return sense * (dist <= hard_max_dist).astype(sense.dtype)


if __name__ == "__main__":
    hard_max_dist = 5.0
    key = jax.random.PRNGKey(0)
    k1, k2 = jax.random.split(key)

    # (a) small pair list, forced through the Pallas kernel
    n_small = 1000
    dist_small = jax.random.uniform(k1, (n_small,), dtype=jnp.float32) * 8.0
    out_small = jax.block_until_ready(
        cos_cutoff(dist_small, hard_max_dist, small_n_threshold=0)
    )
    np.testing.assert_allclose(
        np.asarray(out_small),
        _reference(np.asarray(dist_small), hard_max_dist),
        rtol=1e-5, atol=1e-5,
    )

    # (b) larger, non-multiple-of-1024 pair list: Pallas path with lane padding,
    #     multiple grid steps, and a partial last row-block
    n_big = 70_003
    dist_big = jax.random.uniform(k2, (n_big,), dtype=jnp.float32) * 8.0
    out_big = jax.block_until_ready(cos_cutoff(dist_big, hard_max_dist))
    np.testing.assert_allclose(
        np.asarray(out_big),
        _reference(np.asarray(dist_big), hard_max_dist),
        rtol=1e-5, atol=1e-5,
    )

    # (c) small-n fused fallback (no Pallas) for coverage
    out_fused = jax.block_until_ready(cos_cutoff(dist_small, hard_max_dist))
    np.testing.assert_allclose(
        np.asarray(out_fused),
        _reference(np.asarray(dist_small), hard_max_dist),
        rtol=1e-5, atol=1e-5,
    )

    print("KERNEL_OK")
</pallas_src>

<mosaic_0001>
module attributes {stable_mosaic.version = 11 : i64} {
  func.func @_cos_cutoff_kernel(%arg0: i32, %arg1: memref<2xf32, #tpu.memory_space<smem>>, %arg2: memref<1x1024xf32, #tpu.memory_space<vmem>>, %arg3: memref<1x1024xf32, #tpu.memory_space<vmem>>) attributes {dimension_semantics = [#tpu.dimension_semantics<parallel>], iteration_bounds = array<i64: 1>, scalar_prefetch = 0 : i64, scratch_operands = 0 : i64, tpu.core_type = #tpu.core_type<tc>, window_params = [{transform_indices = @transform_0, window_bounds = array<i64: 2>}, {transform_indices = @transform_1, window_bounds = array<i64: 1, 1024>}, {transform_indices = @transform_2, window_bounds = array<i64: 1, 1024>}]} {
    %c0 = arith.constant 0 : index
    %0 = memref.load %arg1[%c0] : memref<2xf32, #tpu.memory_space<smem>>
    %c1 = arith.constant 1 : index
    %1 = memref.load %arg1[%c1] : memref<2xf32, #tpu.memory_space<smem>>
    %c0_0 = arith.constant 0 : index
    %c0_1 = arith.constant 0 : index
    %2 = vector.load %arg2[%c0_0, %c0_1] : memref<1x1024xf32, #tpu.memory_space<vmem>>, vector<1x1024xf32>
    %3 = vector.broadcast %0 : f32 to vector<1x1024xf32>
    %4 = arith.mulf %3, %2 : vector<1x1024xf32>
    %5 = math.cos %4 : vector<1x1024xf32>
    %6 = vector.broadcast %1 : f32 to vector<1x1024xf32>
    %7 = arith.cmpf ole, %2, %6 : vector<1x1024xf32>
    %8 = arith.mulf %5, %5 : vector<1x1024xf32>
    %cst = arith.constant 0.000000e+00 : f32
    %9 = vector.broadcast %cst : f32 to vector<1x1024xf32>
    %10 = arith.select %7, %8, %9 : vector<1x1024xi1>, vector<1x1024xf32>
    %c0_2 = arith.constant 0 : index
    %c0_3 = arith.constant 0 : index
    %11 = vector.load %arg3[%c0_2, %c0_3] : memref<1x1024xf32, #tpu.memory_space<vmem>>, vector<1x1024xf32>
    tpu.vector_store %arg3[%c0_2, %c0_3], %10 {strides = array<i32>} : memref<1x1024xf32, #tpu.memory_space<vmem>>, vector<1x1024xf32>,
    return
  }
  func.func @transform_0(%arg0: i32) -> i32 {
    %c0_i32 = arith.constant 0 : i32
    %c0_i32_0 = arith.constant 0 : i32
    return %c0_i32 : i32
  }
  func.func @transform_1(%arg0: i32) -> (i32, i32) {
    %c0_i32 = arith.constant 0 : i32
    %c0_i32_0 = arith.constant 0 : i32
    return %arg0, %c0_i32 : i32, i32
  }
  func.func @transform_2(%arg0: i32) -> (i32, i32) {
    %c0_i32 = arith.constant 0 : i32
    %c0_i32_0 = arith.constant 0 : i32
    return %arg0, %c0_i32 : i32, i32
  }
}

</mosaic_0001>

<llo_original>
// kernel: tpu_custom_call.1
$region0: #{tpu_custom_call.1}
  #allocation0 [shape = 'u32[]', space=smem, size = 0x4, offset = 0x4, fixed_abs, tag = 'smem constant byte address 0x4 - core index']
  #allocation1 [shape = 'u32[144,128]{1,0:T(1,128)}', space=vmem, size = 0x12000, scoped, tag = 'internal scratch']
  %s0 = inlined_call_operand.hbm [shape: f32[2], index: 0, kind: input, shape index: {}]
  %s1 = inlined_call_operand.hbm [shape: f32[1,1024], index: 1, kind: input, shape index: {}]
  %s2 = inlined_call_operand.hbm [shape: f32[1,1024], index: 2, kind: output, shape index: {}]
  %s3 = sld [smem:[#allocation0]]
  $region26: #{tpu_custom_call.1} parent=0
    _
  %s5 = ssub.s32 1, %s3
  %s6 = scalar_select 0, %s5, %s3
  $region1: #{tpu_custom_call.1} parent=0
    #allocation2 [shape = 'u8[512]{0}', space=smem, size = 0x200, scoped, tag = 'input window, operand 0, single buffered']
    #allocation3 [shape = 's32[1]{0}', space=sflag, size = 0x4, scoped, tag = 'scoped memory for tpu_custom_call.1']
    #allocation4 [shape = 's32[1]{0}', space=sflag, size = 0x4, scoped, tag = 'scoped memory for tpu_custom_call.1']
    #allocation5 [shape = 's32[1]{0}', space=sflag, size = 0x4, scoped, tag = 'scoped memory for tpu_custom_call.1']
    #allocation6 [shape = 'u8[4096]{0}', space=vmem, size = 0x1000, scoped, tag = 'input window, operand 1, single buffered']
    #allocation7 [shape = 'u8[4096]{0}', space=vmem, size = 0x1000, scoped, tag = 'output window, operand 0, single buffered']
    %7 = vsyncpa [#allocation5], 0
    %8 = vsyncpa [#allocation3], 0
    %9 = vsyncpa [#allocation4], 0
    // Predicated region
    $region2: #{tpu_custom_call.1} parent=1 // pred_check
      _
    $region3: #{tpu_custom_call.1} parent=1 // pred_check_branch
      %11 = sbr.rel (0) target = $region5
    $region4: #{tpu_custom_call.1} parent=1 // pred_region
      %s13 = ssub.s32 16, 16
      %14 = vsyncadd [#allocation5], %s13
      %17 = dma.hbm_to_smem %s0, 16, [#allocation2], [#allocation5]
    $region5: #{tpu_custom_call.1} parent=1 // pred_fallthru
      _
    // Predicated region
    $region6: #{tpu_custom_call.1} parent=1 // pred_check
      _
    $region7: #{tpu_custom_call.1} parent=1 // pred_check_branch
      %19 = sbr.rel (0) target = $region9
    $region8: #{tpu_custom_call.1} parent=1 // pred_region
      %s21 = ssub.s32 128, 128
      %22 = vsyncadd [#allocation3], %s21
      %s24 = sshll.u32 [#allocation6], 4
      %s25 = int_to_ptr.vmem [resolvable:$true] %s24
      %27 = dma.hbm_to_vmem [thread:$0]  %s1, 128, %s25, [#allocation3]
    $region9: #{tpu_custom_call.1} parent=1 // pred_fallthru
      _
    // Predicated region
    $region10: #{tpu_custom_call.1} parent=1 // pred_check
      _
    $region11: #{tpu_custom_call.1} parent=1 // pred_check_branch
      %29 = sbr.rel (0) target = $region13
    $region12: #{tpu_custom_call.1} parent=1 // pred_region
      %30 = dma.done [#allocation5], 16
    $region13: #{tpu_custom_call.1} parent=1 // pred_fallthru
      _
    // Predicated region
    $region14: #{tpu_custom_call.1} parent=1 // pred_check
      _
    $region15: #{tpu_custom_call.1} parent=1 // pred_check_branch
      %32 = sbr.rel (0) target = $region17
    $region16: #{tpu_custom_call.1} parent=1 // pred_region
      %33 = dma.done [#allocation3], 128
    $region17: #{tpu_custom_call.1} parent=1 // pred_fallthru
      _
    %34 = sfence
    %s35 = sld [smem:[#allocation2]]
    %s36 = sld [smem:[#allocation2 + $0x1]]
    %v37 = vld [vmem:[#allocation6] sm:$0xff]
    %v38 = vstv %s35
    %v39 = vmul.f32 %v38, %v37
    %v40 = vand.u32 2147483647, %v39
    %vm41 = vcmp.le.f32.partialorder %v40, 0.7853982
    %vm42 = vcmp.lt.s32.totalorder %v39, 0
    %v43 = vand.u32 %v39, 2139095040
    %v44 = vshrl.u32 %v43, 23
    %v45 = vsub.s32 %v44, 127
    %v46 = vand.u32 2147483647, %v39
    %v47 = vand.u32 %v46, 8388607
    %v48 = vor.u32 %v47, 8388608
    %v49 = vsub.s32 0, %v48
    %v50 = vadd.s32 %v45, 1
    %vm51 = vcmp.gt.s32.totalorder %v50, 0
    %v52 = vsel %vm51, %v50, 0
    %v53 = vshrl.u32 %v52, 5
    %v54 = vand.u32 %v52, 31
    %v55 = vsub.s32 32, %v54
    %v56 = vshrl.u32 683565275, %v55
    %v57 = vshll.u32 683565275, %v54
    %v58 = vshrl.u32 2475754826, %v55
    %v59 = vor.u32 %v57, %v58
    %v60 = vshll.u32 2475754826, %v54
    %v61 = vshrl.u32 2131351028, %v55
    %v62 = vor.u32 %v60, %v61
    %v63 = vshll.u32 2131351028, %v54
    %v64 = vshrl.u32 2102212464, %v55
    %v65 = vor.u32 %v63, %v64
    %v66 = vshll.u32 2102212464, %v54
    %v67 = vshrl.u32 920167782, %v55
    %v68 = vor.u32 %v66, %v67
    %v69 = vshll.u32 920167782, %v54
    %v70 = vshrl.u32 1326507024, %v55
    %v71 = vor.u32 %v69, %v70
    %vm72 = vcmp.lt.s32.totalorder %v53, 1
    %vm73 = vcmp.lt.s32.totalorder %v53, 2
    %vm74 = vcmp.lt.s32.totalorder %v53, 3
    %vm75 = vcmp.lt.s32.totalorder %v53, 4
    %v76 = vsel %vm72, %v56, %v59
    %v77 = vsel %vm75, %v65, 2102212464
    %v78 = vsel %vm74, %v62, %v77
    %v79 = vsel %vm73, %v76, %v78
    %v80 = vsel %vm72, %v59, %v62
    %v81 = vsel %vm75, %v68, 920167782
    %v82 = vsel %vm74, %v65, %v81
    %v83 = vsel %vm73, %v80, %v82
    %v84 = vsel %vm72, %v62, %v65
    %v85 = vsel %vm75, %v71, 1326507024
    %v86 = vsel %vm74, %v68, %v85
    %v87 = vsel %vm73, %v84, %v86
    %v88 = vshll.u32 %v48, 8
    %v89 = vmul.u32.u64.compose %v88, %v87
    %v90 = vextract.low.u32 %v89
    %v91 = vextract.high.u32 %v89
    %v92 = vmul.u32.u64.compose %v88, %v83
    %v93 = vextract.low.u32 %v92
    %v94 = vextract.high.u32 %v92
    %v95 = vmul.u32 %v88, %v79
    %v96 = vadd.s32 %v91, %v93
    %vm97 = vc.u32 %v91, %v93
    %v98 = vadd.s32 %v94, 1
    %v99 = vsel %vm97, %v98, %v94
    %v100 = vadd.s32 %v95, %v99
    %v101 = vadd.s32 %v100, 536870912
    %v102 = vshrl.u32 %v101, 30
    %v103 = vshll.u32 %v102, 30
    %v104 = vsub.s32 %v100, %v103
    %vm105 = vcmp.lt.s32.totalorder %v104, 0
    %v106 = vsub.s32 0, %v104
    %v107 = vsel %vm105, %v106, %v104
    %v108 = vclz %v107
    %v109 = vsub.s32 %v108, 2
    %vm110 = vcmp.gt.s32.totalorder 0, %v109
    %v111 = vsel %vm110, 0, %v109
    %v112 = vsub.s32 32, %v111
    %v113 = vshll.u32 %v104, %v111
    %v114 = vshrl.u32 %v96, %v112
    %v115 = vor.u32 %v113, %v114
    %v116 = vsub.s32 4294967266, %v111
    %v117 = vadd.s32 %v116, 127
    %v118 = vshll.u32 %v117, 23
    %v119 = vor.u32 4788187, %v118
    %v120 = vand.u32 2147483647, %v119
    %v122 = vcvt.s32.f32 %v115
    %v123 = vmul.f32 %v122, %v120
    %v124 = vxor.u32 %v123, 2147483648
    %v125 = vsel %vm42, %v124, %v123
    %v126 = vsub.s32 4, %v102
    %v127 = vsel %vm42, %v126, %v102
    %v128 = vsel %vm41, %v39, %v125
    %v129 = vsel %vm41, 0, %v127
    %v130 = vcosq.f32.pop %v128
    %v131 = vsinq.f32.pop %v128
    %vm132 = vweird.f32 %v39
    %v133 = vand.u32 %v129, 3
    %vm134 = vcmp.lt.s32.totalorder %v133, 2
    %vm135 = vcmp.eq.s32.totalorder %v133, 0
    %v136 = vxor.u32 %v131, 2147483648
    %v137 = vsel %vm135, %v130, %v136
    %vm138 = vcmp.eq.s32.totalorder %v133, 2
    %v139 = vxor.u32 %v130, 2147483648
    %v140 = vsel %vm138, %v139, %v131
    %v141 = vsel %vm134, %v137, %v140
    %v142 = vsel %vm132, nan, %v141
    %v143 = vstv %s36
    %vm144 = vcmp.le.f32.partialorder %v37, %v143
    %v145 = vmul.f32 %v142, %v142
    %v146 = vsel %vm144, %v145, 0.0
    %147 = vst [vmem:[#allocation7] sm:$0xff] %v146
    // Predicated region
    $region18: #{tpu_custom_call.1} parent=1 // pred_check
      _
    $region19: #{tpu_custom_call.1} parent=1 // pred_check_branch
      %149 = sbr.rel (0) target = $region21
    $region20: #{tpu_custom_call.1} parent=1 // pred_region
      %s151 = ssub.s32 128, 128
      %152 = vsyncadd [#allocation4], %s151
      %s154 = sshll.u32 [#allocation7], 4
      %s155 = int_to_ptr.vmem [resolvable:$true] %s154
      %157 = dma.vmem_to_hbm [thread:$0]  %s155, 128, %s2, [#allocation4]
    $region21: #{tpu_custom_call.1} parent=1 // pred_fallthru
      _
    // Predicated region
    $region22: #{tpu_custom_call.1} parent=1 // pred_check
      _
    $region23: #{tpu_custom_call.1} parent=1 // pred_check_branch
      %159 = sbr.rel (0) target = $region25
    $region24: #{tpu_custom_call.1} parent=1 // pred_region
      %160 = dma.done [#allocation4], 128
    $region25: #{tpu_custom_call.1} parent=1 // pred_fallthru
      _
    %161 = vsyncpa [#allocation3], 1
    %162 = vsyncpa [#allocation4], 1
    %163 = vsyncpa [#allocation5], 1

</llo_original>
